<compile_context>
chip_gen: v7x
topology: tpu7x:2x2x1
jax: 0.10.0
libtpu: 0.0.40
codegen_flags: <defaults>
</compile_context>

<pallas_src>
import jax
import jax.numpy as jnp
from jax.experimental import pallas as pl
from jax.experimental.pallas import tpu as pltpu


def _clip_embed_kernel(ids_ref, pos_ids_ref, mask_ref,
                       tok_row_ref, pos_row_ref, cust_ref, out_ref):
    # ids_ref / pos_ids_ref / mask_ref : SMEM (N,) int32 scalar-prefetch arrays.
    #   ids / pos are consumed only by the BlockSpec index_maps (they steer the
    #   row-gather DMAs); mask is read here to apply the inversion override.
    # tok_row_ref : (1, 1, D)  gathered token-embedding row (native dtype)
    # pos_row_ref : (1, 1, D)  gathered position-embedding row
    # cust_ref    : (1, 1, D)  learned placeholder embedding (grid-resident)
    # out_ref     : (1, 1, D)
    del ids_ref, pos_ids_ref  # used only by index_maps
    i = pl.program_id(0)
    # Exact 0/1 blend (w in {0,1}) — avoids a scalar-predicated select and is
    # pure VPU work hidden under the gather DMAs.
    w = (mask_ref[i] != 0).astype(jnp.float32)
    tok = (w * cust_ref[...].astype(jnp.float32)
           + (1.0 - w) * tok_row_ref[...].astype(jnp.float32))
    out_ref[...] = (tok + pos_row_ref[...].astype(jnp.float32)).astype(out_ref.dtype)


def clip_text_embeddings(input_ids, custom_mask, token_table, pos_table,
                         custom_embed, position_ids=None):
    """JAX wrapper mirroring CustomCLIPTextEmbeddings.forward (input_ids path)."""
    B, S = input_ids.shape
    V, D = token_table.shape
    P = pos_table.shape[0]

    # Mirrors `self.position_ids[:, :seq_length]` (slice, then broadcast over B).
    if position_ids is None:
        position_ids = jnp.arange(S, dtype=jnp.int32)[None, :]
    position_ids = jnp.asarray(position_ids, dtype=jnp.int32)[..., :S]
    position_ids = jnp.broadcast_to(position_ids.reshape(-1, S), (B, S))

    N = B * S
    # Scalar-prefetch operands (land in SMEM).  Clamp mirrors jnp.take's
    # clamping and guarantees no OOB row DMA for invalid ids.
    ids_flat = jnp.clip(input_ids.astype(jnp.int32), 0, V - 1).reshape(N)
    pos_flat = jnp.clip(position_ids, 0, P - 1).reshape(N)
    mask_flat = custom_mask.astype(jnp.int32).reshape(N)

    out_dtype = token_table.dtype
    # (rows, 1, D) views are metadata-only reshapes; trailing block dims then
    # equal the full array dims.  Tables keep their caller dtype (no astype).
    tok3 = token_table.reshape(V, 1, D)
    pos3 = pos_table.reshape(P, 1, D)
    cust3 = custom_embed.reshape(1, 1, D)

    def _isz(a):
        return jnp.dtype(a.dtype).itemsize

    cost = pl.CostEstimate(
        flops=2 * N * D,          # blend + add; gathers are pure DMA
        transcendentals=0,
        bytes_accessed=int(N * D * (_isz(token_table) + _isz(pos_table))
                           + N * D * jnp.dtype(out_dtype).itemsize
                           + D * _isz(custom_embed)
                           + 3 * N * 4),
    )

    grid_spec = pltpu.PrefetchScalarGridSpec(
        num_scalar_prefetch=3,
        grid=(N,),
        in_specs=[
            # Token row gather: data-dependent block index from prefetched ids.
            pl.BlockSpec((1, 1, D), lambda i, ids, pos, msk: (ids[i], 0, 0)),
            # Position row gather (also handles caller-supplied position_ids).
            pl.BlockSpec((1, 1, D), lambda i, ids, pos, msk: (pos[i], 0, 0)),
            # Custom embedding: constant block index -> stays VMEM-resident.
            pl.BlockSpec((1, 1, D), lambda i, ids, pos, msk: (0, 0, 0)),
        ],
        out_specs=pl.BlockSpec((1, 1, D), lambda i, ids, pos, msk: (i, 0, 0)),
    )

    out_flat = pl.pallas_call(
        _clip_embed_kernel,
        out_shape=jax.ShapeDtypeStruct((N, 1, D), out_dtype),
        grid_spec=grid_spec,
        compiler_params=pltpu.CompilerParams(
            dimension_semantics=("parallel",)),
        cost_estimate=cost,
    )(ids_flat, pos_flat, mask_flat, tok3, pos3, cust3)

    return out_flat.reshape(B, S, D)


if __name__ == "__main__":
    # Small config consistent with the module:
    #   vocab_size=64, hidden_size=32, max_position_embeddings=16
    B, S, D, V, P = 2, 8, 32, 64, 16
    PLACEHOLDER_ID = 5

    key = jax.random.PRNGKey(0)
    k_tok, k_pos, k_cust, k_ids = jax.random.split(key, 4)

    token_table = jax.random.normal(k_tok, (V, D), dtype=jnp.float32) * 0.02
    pos_table = jax.random.normal(k_pos, (P, D), dtype=jnp.float32) * 0.02
    custom_embed = jax.random.normal(k_cust, (D,), dtype=jnp.float32) * 0.02

    input_ids = jax.random.randint(k_ids, (B, S), 0, V, dtype=jnp.int32)
    # ensure the placeholder token appears (textual-inversion scenario)
    input_ids = input_ids.at[0, 3].set(PLACEHOLDER_ID)
    input_ids = input_ids.at[1, 6].set(PLACEHOLDER_ID)
    custom_mask = (input_ids == PLACEHOLDER_ID)

    out = clip_text_embeddings(input_ids, custom_mask, token_table, pos_table,
                               custom_embed)
    out = jax.block_until_ready(out)

    # pure-JAX reference for correctness
    ref = jnp.take(token_table, input_ids, axis=0)
    ref = jnp.where(custom_mask[..., None], custom_embed[None, None, :], ref)
    ref = ref + jnp.take(pos_table, jnp.arange(S), axis=0)[None, :, :]

    assert out.shape == (B, S, D) and out.dtype == jnp.float32
    assert jnp.allclose(out, ref, atol=1e-5, rtol=1e-5)
    print("KERNEL_OK")
</pallas_src>

<mosaic_0001>
module attributes {stable_mosaic.version = 11 : i64} {
  func.func @_clip_embed_kernel(%arg0: i32, %arg1: memref<16xi32, #tpu.memory_space<smem>>, %arg2: memref<16xi32, #tpu.memory_space<smem>>, %arg3: memref<16xi32, #tpu.memory_space<smem>>, %arg4: memref<1x1x32xf32, #tpu.memory_space<vmem>>, %arg5: memref<1x1x32xf32, #tpu.memory_space<vmem>>, %arg6: memref<1x1x32xf32, #tpu.memory_space<vmem>>, %arg7: memref<1x1x32xf32, #tpu.memory_space<vmem>>) attributes {dimension_semantics = [#tpu.dimension_semantics<parallel>], iteration_bounds = array<i64: 16>, scalar_prefetch = 3 : i64, scratch_operands = 0 : i64, tpu.core_type = #tpu.core_type<tc>, window_params = [{transform_indices = @transform_0, window_bounds = array<i64: 1, 1, 32>}, {transform_indices = @transform_1, window_bounds = array<i64: 1, 1, 32>}, {pipeline_mode = #tpu.pipeline_mode<synchronous>, transform_indices = @transform_2, window_bounds = array<i64: 1, 1, 32>}, {transform_indices = @transform_3, window_bounds = array<i64: 1, 1, 32>}]} {
    %0 = arith.index_cast %arg0 : i32 to index
    %1 = memref.load %arg3[%0] : memref<16xi32, #tpu.memory_space<smem>>
    %c0_i32 = arith.constant 0 : i32
    %2 = arith.cmpi ne, %1, %c0_i32 : i32
    %3 = arith.extui %2 : i1 to i32
    %4 = arith.sitofp %3 : i32 to f32
    %c0 = arith.constant 0 : index
    %c0_0 = arith.constant 0 : index
    %c0_1 = arith.constant 0 : index
    %5 = vector.load %arg6[%c0, %c0_0, %c0_1] : memref<1x1x32xf32, #tpu.memory_space<vmem>>, vector<1x1x32xf32>
    %6 = vector.broadcast %4 : f32 to vector<1x1x32xf32>
    %7 = arith.mulf %6, %5 : vector<1x1x32xf32>
    %cst = arith.constant 1.000000e+00 : f32
    %8 = arith.subf %cst, %4 : f32
    %c0_2 = arith.constant 0 : index
    %c0_3 = arith.constant 0 : index
    %c0_4 = arith.constant 0 : index
    %9 = vector.load %arg4[%c0_2, %c0_3, %c0_4] : memref<1x1x32xf32, #tpu.memory_space<vmem>>, vector<1x1x32xf32>
    %10 = vector.broadcast %8 : f32 to vector<1x1x32xf32>
    %11 = arith.mulf %10, %9 : vector<1x1x32xf32>
    %12 = arith.addf %7, %11 : vector<1x1x32xf32>
    %c0_5 = arith.constant 0 : index
    %c0_6 = arith.constant 0 : index
    %c0_7 = arith.constant 0 : index
    %13 = vector.load %arg5[%c0_5, %c0_6, %c0_7] : memref<1x1x32xf32, #tpu.memory_space<vmem>>, vector<1x1x32xf32>
    %14 = arith.addf %12, %13 : vector<1x1x32xf32>
    %c0_8 = arith.constant 0 : index
    %c0_9 = arith.constant 0 : index
    %c0_10 = arith.constant 0 : index
    %15 = vector.load %arg7[%c0_8, %c0_9, %c0_10] : memref<1x1x32xf32, #tpu.memory_space<vmem>>, vector<1x1x32xf32>
    tpu.vector_store %arg7[%c0_8, %c0_9, %c0_10], %14 {strides = array<i32>} : memref<1x1x32xf32, #tpu.memory_space<vmem>>, vector<1x1x32xf32>,
    return
  }
  func.func @transform_0(%arg0: i32, %arg1: memref<16xi32, #tpu.memory_space<smem>>, %arg2: memref<16xi32, #tpu.memory_space<smem>>, %arg3: memref<16xi32, #tpu.memory_space<smem>>) -> (i32, i32, i32) {
    %0 = arith.index_cast %arg0 : i32 to index
    %1 = memref.load %arg1[%0] : memref<16xi32, #tpu.memory_space<smem>>
    %c0_i32 = arith.constant 0 : i32
    %c0_i32_0 = arith.constant 0 : i32
    %c0_i32_1 = arith.constant 0 : i32
    return %1, %c0_i32, %c0_i32_0 : i32, i32, i32
  }
  func.func @transform_1(%arg0: i32, %arg1: memref<16xi32, #tpu.memory_space<smem>>, %arg2: memref<16xi32, #tpu.memory_space<smem>>, %arg3: memref<16xi32, #tpu.memory_space<smem>>) -> (i32, i32, i32) {
    %0 = arith.index_cast %arg0 : i32 to index
    %1 = memref.load %arg2[%0] : memref<16xi32, #tpu.memory_space<smem>>
    %c0_i32 = arith.constant 0 : i32
    %c0_i32_0 = arith.constant 0 : i32
    %c0_i32_1 = arith.constant 0 : i32
    return %1, %c0_i32, %c0_i32_0 : i32, i32, i32
  }
  func.func @transform_2(%arg0: i32, %arg1: memref<16xi32, #tpu.memory_space<smem>>, %arg2: memref<16xi32, #tpu.memory_space<smem>>, %arg3: memref<16xi32, #tpu.memory_space<smem>>) -> (i32, i32, i32) {
    %c0_i32 = arith.constant 0 : i32
    %c0_i32_0 = arith.constant 0 : i32
    %c0_i32_1 = arith.constant 0 : i32
    %c0_i32_2 = arith.constant 0 : i32
    return %c0_i32, %c0_i32_0, %c0_i32_1 : i32, i32, i32
  }
  func.func @transform_3(%arg0: i32, %arg1: memref<16xi32, #tpu.memory_space<smem>>, %arg2: memref<16xi32, #tpu.memory_space<smem>>, %arg3: memref<16xi32, #tpu.memory_space<smem>>) -> (i32, i32, i32) {
    %c0_i32 = arith.constant 0 : i32
    %c0_i32_0 = arith.constant 0 : i32
    %c0_i32_1 = arith.constant 0 : i32
    return %arg0, %c0_i32, %c0_i32_0 : i32, i32, i32
  }
}

</mosaic_0001>

<llo_original>
// kernel: tpu_custom_call.1
$region0: #{tpu_custom_call.1}
  #allocation0 [shape = 'u32[]', space=smem, size = 0x4, offset = 0x4, fixed_abs, tag = 'smem constant byte address 0x4 - core index']
  #allocation1 [shape = 'u32[144,128]{1,0:T(1,128)}', space=vmem, size = 0x12000, scoped, tag = 'internal scratch']
  #allocation2 [shape = 's32[1]{0}', space=sflag, size = 0x4, scoped, tag = 'scoped memory for tpu_custom_call.1']
  #allocation3 [shape = 'u8[512]{0}', space=smem, size = 0x200, scoped, tag = 'prefetched SMEM operand 0']
  #allocation4 [shape = 'u8[512]{0}', space=smem, size = 0x200, scoped, tag = 'prefetched SMEM operand 1']
  #allocation5 [shape = 'u8[512]{0}', space=smem, size = 0x200, scoped, tag = 'prefetched SMEM operand 2']
  %s0 = inlined_call_operand.vmem [shape: s32[16], index: 0, kind: input, shape index: {}]
  %s1 = inlined_call_operand.vmem [shape: s32[16], index: 1, kind: input, shape index: {}]
  %s2 = inlined_call_operand.vmem [shape: s32[16], index: 2, kind: input, shape index: {}]
  %s3 = inlined_call_operand.vmem [shape: f32[64,1,32], index: 3, kind: input, shape index: {}]
  %s4 = inlined_call_operand.vmem [shape: f32[16,1,32], index: 4, kind: input, shape index: {}]
  %s5 = inlined_call_operand.vmem [shape: f32[1,1,32], index: 5, kind: input, shape index: {}]
  %s6 = inlined_call_operand.hbm [shape: f32[16,1,32], index: 6, kind: output, shape index: {}]
  %s7 = sld [smem:[#allocation0]]
  $region45: #{tpu_custom_call.1} parent=0
    _
  %s9 = ssub.s32 1, %s7
  %s10 = scalar_select 0, %s9, %s7
  %s11 = sshll.u32 %s0, 4
  %s12 = int_to_ptr.vmem [resolvable:$true] %s11
  %14 = dma.vmem_to_smem %s12, 16, [#allocation3], [#allocation2]
  %s15 = sshll.u32 %s1, 4
  %s16 = int_to_ptr.vmem [resolvable:$true] %s15
  %18 = dma.vmem_to_smem %s16, 16, [#allocation4], [#allocation2]
  %s19 = sshll.u32 %s2, 4
  %s20 = int_to_ptr.vmem [resolvable:$true] %s19
  %22 = dma.vmem_to_smem %s20, 16, [#allocation5], [#allocation2]
  %23 = dma.done [#allocation2], 48
  %24 = sfence
  $region1: #{tpu_custom_call.1} parent=0
    #allocation6 [shape = 'u8[1024]{0}', space=vmem, size = 0x400, scoped, tag = 'output window, operand 0']
    #allocation7 [shape = 's32[2]{0}', space=sflag, size = 0x8, scoped, tag = 'scoped memory for tpu_custom_call.1']
    %25 = vsyncpa [#allocation7], 0
    %s26 = scalar_lea.sflag [#allocation7], 1
    %27 = vsyncpa %s26, 0
    loop: start=0, step=1, limit=18
    $region2: #{tpu_custom_call.1} parent=1 // loop_pre_header
      _
    $region3: #{tpu_custom_call.1} parent=1 // loop_header
      %s29 = sphi 0, %s33
      %p30 = scmp.ge.s32.totalorder %s29, 18
      %s41 = sphi 0, %s43
      %s44 = sphi 0, %s41
      %s45 = sphi 0, %s44
      %s61 = sphi 0, %s45
      %s69 = sphi 0, %s71
      %s72 = sphi 0, %s69
      %s73 = sphi 0, %s72
      %s89 = sphi 0, %s73
      %s93 = sphi 0, %s93
      %s95 = sphi 0, %s93
      %s96 = sphi 0, %s95
      %s110 = sphi 0, %s96
      %s116 = sphi 0, %s118
      %s119 = sphi 0, %s116
      %s120 = sphi 0, %s119
      %s136 = sphi 0, %s120
    $region4: #{tpu_custom_call.1} parent=1 // loop_header_branch
      %32 = sbr.rel (%p30) target = $region8
    $region5: #{tpu_custom_call.1} parent=1 // loop_body
      %s34 = ssub.s32 %s29, 1
      %s35 = ssub.s32 %s29, 2
      %s36 = sadd.s32 %s29, 1
      %s37 = sld [smem:[#allocation3 + %s29]]
      %s38 = sld [smem:[#allocation3 + %s36]]
      %s39 = ssub.s32 %s37, %s38
      %p40 = scmp.eq.s32.totalorder %s39, 0
      %s42 = sadd.s32 %s41, 1
      %s43 = scalar_select %p40, %s41, %s42
      %p46 = pneg %p40
      %p47 = scmp.eq.s32.totalorder %s29, 15
      %p48 = por %p46, %p47
      %p49 = scmp.ne.s32.totalorder %s41, %s44
      %p50 = scmp.eq.s32.totalorder %s29, 0
      %p51 = por %p49, %p50
      %p52 = scmp.ne.s32.totalorder %s41, %s44
      %p53 = scmp.eq.s32.totalorder %s34, 15
      %p54 = por %p52, %p53
      %p55 = scmp.ne.s32.totalorder %s44, %s45
      %p56 = scmp.eq.s32.totalorder %s34, 0
      %p57 = por %p55, %p56
      %p58 = scmp.ne.s32.totalorder %s44, %s45
      %p59 = scmp.eq.s32.totalorder %s35, 15
      %p60 = por %p58, %p59
      %p62 = scmp.ne.s32.totalorder %s45, %s61
      %p63 = scmp.eq.s32.totalorder %s35, 0
      %p64 = por %p62, %p63
      %s65 = sld [smem:[#allocation4 + %s29]]
      %s66 = sld [smem:[#allocation4 + %s36]]
      %s67 = ssub.s32 %s65, %s66
      %p68 = scmp.eq.s32.totalorder %s67, 0
      %s70 = sadd.s32 %s69, 1
      %s71 = scalar_select %p68, %s69, %s70
      %p74 = pneg %p68
      %p75 = scmp.eq.s32.totalorder %s29, 15
      %p76 = por %p74, %p75
      %p77 = scmp.ne.s32.totalorder %s69, %s72
      %p78 = scmp.eq.s32.totalorder %s29, 0
      %p79 = por %p77, %p78
      %p80 = scmp.ne.s32.totalorder %s69, %s72
      %p81 = scmp.eq.s32.totalorder %s34, 15
      %p82 = por %p80, %p81
      %p83 = scmp.ne.s32.totalorder %s72, %s73
      %p84 = scmp.eq.s32.totalorder %s34, 0
      %p85 = por %p83, %p84
      %p86 = scmp.ne.s32.totalorder %s72, %s73
      %p87 = scmp.eq.s32.totalorder %s35, 15
      %p88 = por %p86, %p87
      %p90 = scmp.ne.s32.totalorder %s73, %s89
      %p91 = scmp.eq.s32.totalorder %s35, 0
      %p92 = por %p90, %p91
      %s94 = sadd.s32 %s93, 1
      %p97 = scmp.eq.s32.totalorder %s29, 15
      %p98 = scmp.ne.s32.totalorder %s93, %s95
      %p99 = scmp.eq.s32.totalorder %s29, 0
      %p100 = por %p98, %p99
      %p101 = scmp.ne.s32.totalorder %s93, %s95
      %p102 = scmp.eq.s32.totalorder %s34, 15
      %p103 = por %p101, %p102
      %p104 = scmp.ne.s32.totalorder %s95, %s96
      %p105 = scmp.eq.s32.totalorder %s34, 0
      %p106 = por %p104, %p105
      %p107 = scmp.ne.s32.totalorder %s95, %s96
      %p108 = scmp.eq.s32.totalorder %s35, 15
      %p109 = por %p107, %p108
      %p111 = scmp.ne.s32.totalorder %s96, %s110
      %p112 = scmp.eq.s32.totalorder %s35, 0
      %p113 = por %p111, %p112
      %s114 = ssub.s32 %s29, %s36
      %p115 = scmp.eq.s32.totalorder %s114, 0
      %s117 = sadd.s32 %s116, 1
      %s118 = scalar_select %p115, %s116, %s117
      %p121 = pneg %p115
      %p122 = scmp.eq.s32.totalorder %s29, 15
      %p123 = por %p121, %p122
      %p124 = scmp.ne.s32.totalorder %s116, %s119
      %p125 = scmp.eq.s32.totalorder %s29, 0
      %p126 = por %p124, %p125
      %p127 = scmp.ne.s32.totalorder %s116, %s119
      %p128 = scmp.eq.s32.totalorder %s34, 15
      %p129 = por %p127, %p128
      %p130 = scmp.ne.s32.totalorder %s119, %s120
      %p131 = scmp.eq.s32.totalorder %s34, 0
      %p132 = por %p130, %p131
      %p133 = scmp.ne.s32.totalorder %s119, %s120
      %p134 = scmp.eq.s32.totalorder %s35, 15
      %p135 = por %p133, %p134
      %p137 = scmp.ne.s32.totalorder %s120, %s136
      %p138 = scmp.eq.s32.totalorder %s35, 0
      %p139 = por %p137, %p138
      %p140 = scmp.le.s32.totalorder 1, %s29
      %p141 = scmp.lt.s32.totalorder %s29, 17
      %p142 = pnand %p140, %p141
      %p143 = pneg %p142
      // Predicated region
      $region9: #{tpu_custom_call.1} parent=5 // pred_check
        _
      $region10: #{tpu_custom_call.1} parent=5 // pred_check_branch
        %145 = sbr.rel (%p142) target = $region12
      $region11: #{tpu_custom_call.1} parent=5 // pred_region
        %s146 = ssub.s32 %s29, 1
        // Predicated region
        $region13: #{tpu_custom_call.1} parent=11 // pred_check
          %p147 = pneg %p106
        $region14: #{tpu_custom_call.1} parent=11 // pred_check_branch
          %149 = sbr.rel (%p147) target = $region16
        $region15: #{tpu_custom_call.1} parent=11 // pred_region
          _
        $region16: #{tpu_custom_call.1} parent=11 // pred_fallthru
          _
      $region12: #{tpu_custom_call.1} parent=5 // pred_fallthru
        _
      %p150 = scmp.lt.s32.totalorder %s29, 16
      // Predicated region
      $region17: #{tpu_custom_call.1} parent=5 // pred_check
        %p151 = pneg %p150
      $region18: #{tpu_custom_call.1} parent=5 // pred_check_branch
        %153 = sbr.rel (%p151) target = $region20
      $region19: #{tpu_custom_call.1} parent=5 // pred_region
        // Predicated region
        $region21: #{tpu_custom_call.1} parent=19 // pred_check
          %p154 = pneg %p51
        $region22: #{tpu_custom_call.1} parent=19 // pred_check_branch
          %156 = sbr.rel (%p154) target = $region24
        $region23: #{tpu_custom_call.1} parent=19 // pred_region
          %s157 = sld [smem:[#allocation3 + %s29]]
          %p158 = scmp.lt.s32.totalorder %s157, 63
          %s159 = scalar_select %p158, %s157, 63
          %s160 = scalar_lea.vmem %s3, %s159
          %s161 = sld [smem:[#allocation3 + %s29]]
        $region24: #{tpu_custom_call.1} parent=19 // pred_fallthru
          _
        // Predicated region
        $region25: #{tpu_custom_call.1} parent=19 // pred_check
          %p162 = pneg %p79
        $region26: #{tpu_custom_call.1} parent=19 // pred_check_branch
          %164 = sbr.rel (%p162) target = $region28
        $region27: #{tpu_custom_call.1} parent=19 // pred_region
          %s165 = sld [smem:[#allocation4 + %s29]]
          %p166 = scmp.lt.s32.totalorder %s165, 15
          %s167 = scalar_select %p166, %s165, 15
          %s168 = scalar_lea.vmem %s4, %s167
          %s169 = sld [smem:[#allocation4 + %s29]]
        $region28: #{tpu_custom_call.1} parent=19 // pred_fallthru
          _
      $region20: #{tpu_custom_call.1} parent=5 // pred_fallthru
        _
      %p170 = scmp.le.s32.totalorder 1, %s29
      %p171 = scmp.lt.s32.totalorder %s29, 17
      %p172 = pnand %p170, %p171
      %p173 = pneg %p172
      // Predicated region
      $region29: #{tpu_custom_call.1} parent=5 // pred_check
        _
      $region30: #{tpu_custom_call.1} parent=5 // pred_check_branch
        %175 = sbr.rel (%p172) target = $region32
      $region31: #{tpu_custom_call.1} parent=5 // pred_region
        %s176 = ssub.s32 %s29, 1
        %s177 = sld [smem:[#allocation3 + %s34]]
        %p178 = scmp.lt.s32.totalorder %s177, 63
        %s179 = scalar_select %p178, %s177, 63
        %s180 = scalar_lea.vmem %s3, %s179
        %p181 = pneg %p57
        %p182 = pneg %p54
        %s183 = sld [smem:[#allocation4 + %s34]]
        %p184 = scmp.lt.s32.totalorder %s183, 15
        %s185 = scalar_select %p184, %s183, 15
        %s186 = scalar_lea.vmem %s4, %s185
        %p187 = pneg %p85
        %p188 = pneg %p82
        %p189 = pneg %p106
        %p190 = pneg %p103
        %p191 = pneg %p132
        %p192 = pneg %p129
        %s193 = sand.u32 %s119, 1
        %s194 = scalar_lea.sflag [#allocation7], %s193
        %s195 = sand.u32 %s119, 1
        %s196 = scalar_lea.vmem [#allocation6], %s195
        %s197 = sld [smem:[#allocation3 + %s34]]
        %p198 = scmp.lt.s32.totalorder %s197, 63
        %s199 = scalar_select %p198, %s197, 63
        %s200 = scalar_lea.vmem %s3, %s199
        %s201 = sld [smem:[#allocation3 + %s34]]
        %s202 = sld [smem:[#allocation4 + %s34]]
        %p203 = scmp.lt.s32.totalorder %s202, 15
        %s204 = scalar_select %p203, %s202, 15
        %s205 = scalar_lea.vmem %s4, %s204
        %s206 = sld [smem:[#allocation4 + %s34]]
        %s207 = sld [smem:[#allocation5 + %s34]]
        %p208 = scmp.ne.s32.totalorder %s207, 0
        %s209 = scalar_select %p208, 1, 0
        %s210 = scvt.s32.f32 %s209
        %v211 = vld [vmem:[%s5] sm:$0x1]
        %v212 = vstv %s210
        %v213 = vmul.f32 %v212, %v211
        %s214 = ssub.f32 1.0, %s210
        %v215 = vld [vmem:[%s200] sm:$0x1]
        %v216 = vstv %s214
        %v217 = vmul.f32 %v216, %v215
        %v218 = vadd.f32 %v213, %v217
        %v219 = vld [vmem:[%s205] sm:$0x1]
        %v220 = vadd.f32 %v218, %v219
        %vm221 = vcmask 253952
        %222 = vst.msk [vmem:[%s196] sm:$0x1] %vm221, %v220
        %s223 = sand.u32 %s119, 1
        %s224 = scalar_lea.sflag [#allocation7], %s223
        %s225 = sand.u32 %s119, 1
        %s226 = scalar_lea.vmem [#allocation6], %s225
        // Predicated region
        $region33: #{tpu_custom_call.1} parent=31 // pred_check
          %p227 = pneg %p129
        $region34: #{tpu_custom_call.1} parent=31 // pred_check_branch
          %229 = sbr.rel (%p227) target = $region36
        $region35: #{tpu_custom_call.1} parent=31 // pred_region
          %s231 = ssub.s32 16, 16
          %232 = vsyncadd %s224, %s231
          %s233 = smul.addr %s34, 16
          %s234 = scalar_lea.hbm %s6, %s233
          %s236 = sshll.u32 %s226, 4
          %s237 = int_to_ptr.vmem [resolvable:$true] %s236
          %239 = dma.vmem_to_hbm [thread:$0]  %s237, 16, %s234, %s224
        $region36: #{tpu_custom_call.1} parent=31 // pred_fallthru
          _
      $region32: #{tpu_custom_call.1} parent=5 // pred_fallthru
        _
      %p240 = scmp.le.s32.totalorder 2, %s29
      // Predicated region
      $region37: #{tpu_custom_call.1} parent=5 // pred_check
        %p241 = pneg %p240
      $region38: #{tpu_custom_call.1} parent=5 // pred_check_branch
        %243 = sbr.rel (%p241) target = $region40
      $region39: #{tpu_custom_call.1} parent=5 // pred_region
        %s244 = ssub.s32 %s29, 2
        // Predicated region
        $region41: #{tpu_custom_call.1} parent=39 // pred_check
          %p245 = pneg %p135
        $region42: #{tpu_custom_call.1} parent=39 // pred_check_branch
          %247 = sbr.rel (%p245) target = $region44
        $region43: #{tpu_custom_call.1} parent=39 // pred_region
          %s248 = sand.u32 %s120, 1
          %s249 = scalar_lea.sflag [#allocation7], %s248
          %s250 = sand.u32 %s120, 1
          %s251 = scalar_lea.vmem [#allocation6], %s250
          %252 = dma.done %s249, 16
        $region44: #{tpu_custom_call.1} parent=39 // pred_fallthru
          _
      $region40: #{tpu_custom_call.1} parent=5 // pred_fallthru
        _
    $region6: #{tpu_custom_call.1} parent=1 // loop_footer
      %s33 = sadd.s32 1, %s29
    $region7: #{tpu_custom_call.1} parent=1 // loop_footer_branch
      %28 = sbr.rel target = $region3
    $region8: #{tpu_custom_call.1} parent=1 // loop_exit
      _
    %253 = vsyncpa [#allocation7], 1
    %s254 = scalar_lea.sflag [#allocation7], 1
    %255 = vsyncpa %s254, 1

</llo_original>
